<compile_context>
chip_gen: v6e
topology: v6e:2x2x1
jax: 0.10.0
libtpu: 0.0.40
codegen_flags: <defaults>
</compile_context>

<pallas_src>
import functools
import math

import jax
import jax.numpy as jnp
from jax.experimental import pallas as pl
from jax.experimental.pallas import tpu as pltpu


# ----------------------------- shared im2col -------------------------------

def _stage_im2col(x_ref, col_ref, *, K, C_in, T, V, pad, stride, t_out, n_blk):
    """Stage a zero-padded, stride-aware im2col into the VMEM scratch.

    x_ref  : (n_blk, C_in, T*V)        input block ((T,V) flattened t-major)
    col_ref: (K*C_in, n_blk*t_out*V)   im2col scratch, rows ordered (k, ci)

    Only the padding-border columns are zero-filled; every other column is
    overwritten with fresh data each step, so no full-scratch memset runs.
    Row offsets are k*C_in: for production C_in (multiples of 8) every tap
    write starts on an 8-sublane boundary; for tiny C_in (e.g. 4) each write
    still lands inside a single (8,128) tile band, so zero-padding taps to 8
    rows would not reduce vst count and would add pad-row zeroing — skipped.
    """
    tw = t_out * V
    for i in range(n_blk):                      # static python loops; K, n_blk small
        base = i * tw
        for k in range(K):
            rows = slice(k * C_in, (k + 1) * C_in)
            if stride == 1:
                lo_t = max(0, pad - k)                  # first valid output t
                hi_t = min(t_out, T + pad - k)          # one past last valid t
                if lo_t > 0:                            # left padding border only
                    col_ref[rows, base:base + lo_t * V] = jnp.zeros(
                        (C_in, lo_t * V), col_ref.dtype)
                if hi_t < t_out:                        # right padding border only
                    col_ref[rows, base + hi_t * V:base + tw] = jnp.zeros(
                        (C_in, (t_out - hi_t) * V), col_ref.dtype)
                if lo_t < hi_t:
                    src_lo = lo_t + k - pad
                    src_hi = hi_t + k - pad
                    col_ref[rows, base + lo_t * V:base + hi_t * V] = (
                        x_ref[i, :, src_lo * V:src_hi * V].astype(col_ref.dtype))
            else:
                # stride > 1: stage only surviving output positions
                # (source time index t*stride + k - pad).
                # TODO(synk): per-t V-wide copies; a strided pl.ds read would
                # need a lane relayout because V < 128.
                for t in range(t_out):
                    src_t = t * stride + k - pad
                    dst = slice(base + t * V, base + (t + 1) * V)
                    if 0 <= src_t < T:
                        col_ref[rows, dst] = x_ref[
                            i, :, src_t * V:(src_t + 1) * V].astype(col_ref.dtype)
                    else:
                        col_ref[rows, dst] = jnp.zeros((C_in, V), col_ref.dtype)


# ----------------------------- Pallas kernels ------------------------------

def _tcn_stats_kernel(x_ref, w_ref, stats_ref, col_ref, *,
                      K, C_in, T, V, pad, stride, t_out, n_blk):
    """Pass 1: conv (no bias) + per-block BN partial stats (sum, centered M2).

    stats_ref: (1, C_out, 2) — [:, :, 0] = sum, [:, :, 1] = sum((x-mean_blk)^2).
    """
    _stage_im2col(x_ref, col_ref, K=K, C_in=C_in, T=T, V=V, pad=pad,
                  stride=stride, t_out=t_out, n_blk=n_blk)
    # Single deep-contraction MXU matmul: (C_out, K*C_in) x (K*C_in, n_blk*t_out*V).
    acc = jnp.dot(w_ref[...], col_ref[...], preferred_element_type=jnp.float32)
    cnt = n_blk * t_out * V
    s = jnp.sum(acc, axis=1, keepdims=True)              # (C_out, 1)
    d = acc - s * (1.0 / cnt)                            # centered within block
    m2 = jnp.sum(d * d, axis=1, keepdims=True)           # (C_out, 1)
    stats_ref[0] = jnp.concatenate([s, m2], axis=1)      # one (C_out, 2) store


def _tcn_conv_bn_kernel(x_ref, w_ref, scale_ref, shift_ref, o_ref, col_ref, *,
                        K, C_in, T, V, pad, stride, t_out, n_blk):
    """Pass 2: recompute conv, apply folded BN scale/shift, single HBM write."""
    _stage_im2col(x_ref, col_ref, K=K, C_in=C_in, T=T, V=V, pad=pad,
                  stride=stride, t_out=t_out, n_blk=n_blk)
    acc = jnp.dot(w_ref[...], col_ref[...], preferred_element_type=jnp.float32)
    y = acc * scale_ref[...] + shift_ref[...]            # (C_out, n_blk*t_out*V)
    tw = t_out * V
    for i in range(n_blk):                               # lane-dense (C_out, t_out*V) stores
        o_ref[i] = y[:, i * tw:(i + 1) * tw].astype(o_ref.dtype)


# ------------------------------ host wrapper -------------------------------

def _choose_n_blk(N, per_sample_bytes, *, target_bytes=1 << 20,
                  vmem_budget_bytes=8 << 20):
    """Largest divisor of N that (a) keeps >= 2 parallel grid steps when N >= 2
    (v7x has 2 TensorCores), (b) stays under a per-step VMEM budget, and
    (c) reaches ~target_bytes of work per step when possible."""
    best = 1
    for cand in range(1, N + 1):
        if N % cand:
            continue
        if N >= 2 and N // cand < 2:
            continue
        if cand * per_sample_bytes > vmem_budget_bytes:
            continue
        best = cand
        if cand * per_sample_bytes >= target_bytes:
            break
    return best


def unit_tcn_forward(x, weight, bias, gamma, beta, *,
                     kernel_size=9, stride=1, eps=1e-5,
                     staging_dtype=jnp.float32):
    """x: (N, C_in, T, V) f32;  weight: (C_out, C_in, K) f32 (W=1 dim dropped).

    BatchNorm uses PyTorch training-mode batch statistics (biased variance).
    The per-channel conv bias folds exactly into the host-side BN shift under
    batch statistics:
        BN(conv + b) = (conv + b - (mean_conv + b)) * gamma/sqrt(var + eps) + beta
                     = conv * scale + (beta - mean_conv * scale)
    so the kernels never touch it (var is also bias-invariant).
    # TODO(synk): eval-mode BatchNorm (running-stats buffers) is module state
    # with no kernel-side equivalent here; only training-mode stats are done.
    """
    del bias  # exactly cancelled by the batch mean (see docstring algebra)
    N, C_in, T, V = x.shape
    C_out, _, K = weight.shape
    assert K == kernel_size
    pad = (kernel_size - 1) // 2
    t_out = (T + 2 * pad - K) // stride + 1        # PyTorch output length
    tw = t_out * V

    # Metadata-only flatten of (T, V) into one lane-dense axis (no HBM copy,
    # no jnp.pad — padding is materialised inside the kernels' VMEM scratch).
    x_flat = x.reshape(N, C_in, T * V)
    # Contraction rows ordered (k, ci) k-major to match the im2col scratch.
    w2 = jnp.transpose(weight, (0, 2, 1)).reshape(C_out, K * C_in)
    w2 = w2.astype(staging_dtype)

    # --- batch blocking + VMEM budget (re-derived, holds on v7x's 64 MiB) ----
    itemsize = jnp.dtype(staging_dtype).itemsize
    per_sample_bytes = (2 * C_in * T * V * 4          # double-buffered x block (f32)
                        + 2 * C_out * tw * 4          # double-buffered out block (f32)
                        + K * C_in * tw * itemsize)   # im2col scratch share
    n_blk = _choose_n_blk(N, per_sample_bytes)
    n_blocks = N // n_blk
    vmem_limit = int(max(4 << 20, min(48 << 20, 2 * n_blk * per_sample_bytes)))
    compiler_params = pltpu.CompilerParams(
        dimension_semantics=("parallel",),
        vmem_limit_bytes=vmem_limit)

    kern_kw = dict(K=K, C_in=C_in, T=T, V=V, pad=pad, stride=stride,
                   t_out=t_out, n_blk=n_blk)
    col_scratch = pltpu.VMEM((K * C_in, n_blk * tw), staging_dtype)
    x_spec = pl.BlockSpec((n_blk, C_in, T * V), lambda b: (b, 0, 0))
    w_spec = pl.BlockSpec((C_out, K * C_in), lambda b: (0, 0))

    # --- pass 1: tiny per-block BN partial statistics (no big intermediate) ---
    stats = pl.pallas_call(
        functools.partial(_tcn_stats_kernel, **kern_kw),
        out_shape=jax.ShapeDtypeStruct((n_blocks, C_out, 2), jnp.float32),
        grid_spec=pltpu.PrefetchScalarGridSpec(
            num_scalar_prefetch=0,
            grid=(n_blocks,),
            in_specs=[x_spec, w_spec],
            out_specs=pl.BlockSpec((1, C_out, 2), lambda b: (b, 0, 0)),
            scratch_shapes=[col_scratch]),
        compiler_params=compiler_params,
    )(x_flat, w2)

    # --- host-side Chan (parallel Welford) combine of the block statistics ----
    cnt_blk = float(n_blk * t_out * V)
    cnt_tot = float(N * t_out * V)
    sums = stats[:, :, 0]                          # (n_blocks, C_out)
    m2s = stats[:, :, 1]
    mean_blk = sums / cnt_blk
    mean_conv = jnp.sum(sums, axis=0) / cnt_tot
    var = (jnp.sum(m2s, axis=0)
           + cnt_blk * jnp.sum((mean_blk - mean_conv[None, :]) ** 2, axis=0)
           ) / cnt_tot
    var = jnp.maximum(var, 0.0)
    scale = gamma / jnp.sqrt(var + eps)
    shift = beta - mean_conv * scale

    # --- pass 2: recompute conv + fused BN affine, single HBM write of Y ------
    out_flat = pl.pallas_call(
        functools.partial(_tcn_conv_bn_kernel, **kern_kw),
        out_shape=jax.ShapeDtypeStruct((N, C_out, tw), jnp.float32),
        grid_spec=pltpu.PrefetchScalarGridSpec(
            num_scalar_prefetch=0,
            grid=(n_blocks,),
            in_specs=[x_spec, w_spec,
                      pl.BlockSpec((C_out, 1), lambda b: (0, 0)),
                      pl.BlockSpec((C_out, 1), lambda b: (0, 0))],
            out_specs=pl.BlockSpec((n_blk, C_out, tw), lambda b: (b, 0, 0)),
            scratch_shapes=[col_scratch]),
        compiler_params=compiler_params,
    )(x_flat, w2,
      scale.reshape(C_out, 1).astype(jnp.float32),
      shift.reshape(C_out, 1).astype(jnp.float32))

    # TODO(synk): for production C_out (64-256), add a C_out grid axis tiled to
    # 128 (v5e) / 256 (v6e, v7x) rows per matmul so the MXU rows are filled.

    # Restore the 4-D (N, C_out, T_out, V) view last (metadata-only reshape).
    return out_flat.reshape(N, C_out, t_out, V)


# ------------------------------ reference (JAX) ----------------------------

def unit_tcn_reference(x, weight, bias, gamma, beta, *,
                       kernel_size=9, stride=1, eps=1e-5):
    pad = (kernel_size - 1) // 2
    w4 = weight[..., None]                        # (C_out, C_in, K, 1)
    y = jax.lax.conv_general_dilated(
        x, w4, window_strides=(stride, 1), padding=((pad, pad), (0, 0)),
        dimension_numbers=("NCHW", "OIHW", "NCHW"))
    y = y + bias[None, :, None, None]
    mean = jnp.mean(y, axis=(0, 2, 3), keepdims=True)
    var = jnp.var(y, axis=(0, 2, 3), keepdims=True)
    return ((y - mean) / jnp.sqrt(var + eps)) * gamma[None, :, None, None] \
        + beta[None, :, None, None]


# ----------------------------------- main -----------------------------------

if __name__ == "__main__":
    # Small shapes consistent with unit_tcn: x is (N, C_in, T, V).
    N, C_in, C_out, T, V = 2, 4, 8, 16, 16
    kernel_size, stride = 9, 1

    key = jax.random.PRNGKey(0)
    k_x, k_w = jax.random.split(key)

    x = jax.random.normal(k_x, (N, C_in, T, V), dtype=jnp.float32)

    # Deterministic parameter init mirroring the module's __init__:
    #   conv weight ~ kaiming_normal_(mode='fan_out'): std = sqrt(2 / (C_out*K*1))
    fan_out = C_out * kernel_size * 1
    w_std = math.sqrt(2.0 / fan_out)
    weight = jax.random.normal(k_w, (C_out, C_in, kernel_size),
                               dtype=jnp.float32) * w_std
    bias = jnp.zeros((C_out,), jnp.float32)       # conv bias init to 0
    gamma = jnp.ones((C_out,), jnp.float32)       # bn weight init to 1
    beta = jnp.zeros((C_out,), jnp.float32)       # bn bias init to 0

    out = unit_tcn_forward(x, weight, bias, gamma, beta,
                           kernel_size=kernel_size, stride=stride)
    out = jax.block_until_ready(out)

    ref = unit_tcn_reference(x, weight, bias, gamma, beta,
                             kernel_size=kernel_size, stride=stride)
    pad = (kernel_size - 1) // 2
    t_out = (T + 2 * pad - kernel_size) // stride + 1
    assert out.shape == (N, C_out, t_out, V), out.shape
    max_err = float(jnp.max(jnp.abs(out - ref)))
    assert jnp.allclose(out, ref, atol=1e-4, rtol=1e-4), max_err

    print("KERNEL_OK")
</pallas_src>

<mosaic_0001>
module attributes {stable_mosaic.version = 11 : i64} {
  func.func @_tcn_stats_kernel(%arg0: i32, %arg1: memref<1x4x256xf32, #tpu.memory_space<vmem>>, %arg2: memref<8x36xf32, #tpu.memory_space<vmem>>, %arg3: memref<1x8x2xf32, #tpu.memory_space<vmem>>, %arg4: memref<36x256xf32, #tpu.memory_space<vmem>>) attributes {dimension_semantics = [#tpu.dimension_semantics<parallel>], iteration_bounds = array<i64: 2>, scalar_prefetch = 0 : i64, scratch_operands = 1 : i64, tpu.core_type = #tpu.core_type<tc>, window_params = [{transform_indices = @transform_0, window_bounds = array<i64: 1, 4, 256>}, {pipeline_mode = #tpu.pipeline_mode<synchronous>, transform_indices = @transform_1, window_bounds = array<i64: 8, 36>}, {transform_indices = @transform_2, window_bounds = array<i64: 1, 8, 2>}]} {
    %cst = arith.constant 0.000000e+00 : f32
    %0 = vector.broadcast %cst : f32 to vector<4x64xf32>
    %c0 = arith.constant 0 : index
    %c0_0 = arith.constant 0 : index
    %1 = vector.load %arg4[%c0, %c0_0] : memref<36x256xf32, #tpu.memory_space<vmem>>, vector<4x64xf32>
    tpu.vector_store %arg4[%c0, %c0_0], %0 {strides = array<i32>} : memref<36x256xf32, #tpu.memory_space<vmem>>, vector<4x64xf32>,
    %c0_1 = arith.constant 0 : index
    %c0_2 = arith.constant 0 : index
    %c0_3 = arith.constant 0 : index
    %2 = vector.load %arg1[%c0_1, %c0_2, %c0_3] : memref<1x4x256xf32, #tpu.memory_space<vmem>>, vector<1x4x192xf32>
    %3 = vector.shape_cast %2 : vector<1x4x192xf32> to vector<4x192xf32>
    %c0_4 = arith.constant 0 : index
    %c64 = arith.constant 64 : index
    %4 = vector.load %arg4[%c0_4, %c64] : memref<36x256xf32, #tpu.memory_space<vmem>>, vector<4x192xf32>
    tpu.vector_store %arg4[%c0_4, %c64], %3 {strides = array<i32>} : memref<36x256xf32, #tpu.memory_space<vmem>>, vector<4x192xf32>,
    %cst_5 = arith.constant 0.000000e+00 : f32
    %5 = vector.broadcast %cst_5 : f32 to vector<4x48xf32>
    %c4 = arith.constant 4 : index
    %c0_6 = arith.constant 0 : index
    %6 = vector.load %arg4[%c4, %c0_6] : memref<36x256xf32, #tpu.memory_space<vmem>>, vector<4x48xf32>
    tpu.vector_store %arg4[%c4, %c0_6], %5 {strides = array<i32>} : memref<36x256xf32, #tpu.memory_space<vmem>>, vector<4x48xf32>,
    %c0_7 = arith.constant 0 : index
    %c0_8 = arith.constant 0 : index
    %c0_9 = arith.constant 0 : index
    %7 = vector.load %arg1[%c0_7, %c0_8, %c0_9] : memref<1x4x256xf32, #tpu.memory_space<vmem>>, vector<1x4x208xf32>
    %8 = vector.shape_cast %7 : vector<1x4x208xf32> to vector<4x208xf32>
    %c4_10 = arith.constant 4 : index
    %c48 = arith.constant 48 : index
    %9 = vector.load %arg4[%c4_10, %c48] : memref<36x256xf32, #tpu.memory_space<vmem>>, vector<4x208xf32>
    tpu.vector_store %arg4[%c4_10, %c48], %8 {strides = array<i32>} : memref<36x256xf32, #tpu.memory_space<vmem>>, vector<4x208xf32>,
    %cst_11 = arith.constant 0.000000e+00 : f32
    %10 = vector.broadcast %cst_11 : f32 to vector<4x32xf32>
    %c8 = arith.constant 8 : index
    %c0_12 = arith.constant 0 : index
    %11 = vector.load %arg4[%c8, %c0_12] : memref<36x256xf32, #tpu.memory_space<vmem>>, vector<4x32xf32>
    tpu.vector_store %arg4[%c8, %c0_12], %10 {strides = array<i32>} : memref<36x256xf32, #tpu.memory_space<vmem>>, vector<4x32xf32>,
    %c0_13 = arith.constant 0 : index
    %c0_14 = arith.constant 0 : index
    %c0_15 = arith.constant 0 : index
    %12 = vector.load %arg1[%c0_13, %c0_14, %c0_15] : memref<1x4x256xf32, #tpu.memory_space<vmem>>, vector<1x4x224xf32>
    %13 = vector.shape_cast %12 : vector<1x4x224xf32> to vector<4x224xf32>
    %c8_16 = arith.constant 8 : index
    %c32 = arith.constant 32 : index
    %14 = vector.load %arg4[%c8_16, %c32] : memref<36x256xf32, #tpu.memory_space<vmem>>, vector<4x224xf32>
    tpu.vector_store %arg4[%c8_16, %c32], %13 {strides = array<i32>} : memref<36x256xf32, #tpu.memory_space<vmem>>, vector<4x224xf32>,
    %cst_17 = arith.constant 0.000000e+00 : f32
    %15 = vector.broadcast %cst_17 : f32 to vector<4x16xf32>
    %c12 = arith.constant 12 : index
    %c0_18 = arith.constant 0 : index
    %16 = vector.load %arg4[%c12, %c0_18] : memref<36x256xf32, #tpu.memory_space<vmem>>, vector<4x16xf32>
    tpu.vector_store %arg4[%c12, %c0_18], %15 {strides = array<i32>} : memref<36x256xf32, #tpu.memory_space<vmem>>, vector<4x16xf32>,
    %c0_19 = arith.constant 0 : index
    %c0_20 = arith.constant 0 : index
    %c0_21 = arith.constant 0 : index
    %17 = vector.load %arg1[%c0_19, %c0_20, %c0_21] : memref<1x4x256xf32, #tpu.memory_space<vmem>>, vector<1x4x240xf32>
    %18 = vector.shape_cast %17 : vector<1x4x240xf32> to vector<4x240xf32>
    %c12_22 = arith.constant 12 : index
    %c16 = arith.constant 16 : index
    %19 = vector.load %arg4[%c12_22, %c16] : memref<36x256xf32, #tpu.memory_space<vmem>>, vector<4x240xf32>
    tpu.vector_store %arg4[%c12_22, %c16], %18 {strides = array<i32>} : memref<36x256xf32, #tpu.memory_space<vmem>>, vector<4x240xf32>,
    %c0_23 = arith.constant 0 : index
    %c0_24 = arith.constant 0 : index
    %c0_25 = arith.constant 0 : index
    %20 = vector.load %arg1[%c0_23, %c0_24, %c0_25] : memref<1x4x256xf32, #tpu.memory_space<vmem>>, vector<1x4x256xf32>
    %21 = vector.shape_cast %20 : vector<1x4x256xf32> to vector<4x256xf32>
    %c16_26 = arith.constant 16 : index
    %c0_27 = arith.constant 0 : index
    %22 = vector.load %arg4[%c16_26, %c0_27] : memref<36x256xf32, #tpu.memory_space<vmem>>, vector<4x256xf32>
    tpu.vector_store %arg4[%c16_26, %c0_27], %21 {strides = array<i32>} : memref<36x256xf32, #tpu.memory_space<vmem>>, vector<4x256xf32>,
    %cst_28 = arith.constant 0.000000e+00 : f32
    %23 = vector.broadcast %cst_28 : f32 to vector<4x16xf32>
    %c20 = arith.constant 20 : index
    %c240 = arith.constant 240 : index
    %24 = vector.load %arg4[%c20, %c240] : memref<36x256xf32, #tpu.memory_space<vmem>>, vector<4x16xf32>
    tpu.vector_store %arg4[%c20, %c240], %23 {strides = array<i32>} : memref<36x256xf32, #tpu.memory_space<vmem>>, vector<4x16xf32>,
    %c0_29 = arith.constant 0 : index
    %c0_30 = arith.constant 0 : index
    %c16_31 = arith.constant 16 : index
    %25 = vector.load %arg1[%c0_29, %c0_30, %c16_31] : memref<1x4x256xf32, #tpu.memory_space<vmem>>, vector<1x4x240xf32>
    %26 = vector.shape_cast %25 : vector<1x4x240xf32> to vector<4x240xf32>
    %c20_32 = arith.constant 20 : index
    %c0_33 = arith.constant 0 : index
    %27 = vector.load %arg4[%c20_32, %c0_33] : memref<36x256xf32, #tpu.memory_space<vmem>>, vector<4x240xf32>
    tpu.vector_store %arg4[%c20_32, %c0_33], %26 {strides = array<i32>} : memref<36x256xf32, #tpu.memory_space<vmem>>, vector<4x240xf32>,
    %cst_34 = arith.constant 0.000000e+00 : f32
    %28 = vector.broadcast %cst_34 : f32 to vector<4x32xf32>
    %c24 = arith.constant 24 : index
    %c224 = arith.constant 224 : index
    %29 = vector.load %arg4[%c24, %c224] : memref<36x256xf32, #tpu.memory_space<vmem>>, vector<4x32xf32>
    tpu.vector_store %arg4[%c24, %c224], %28 {strides = array<i32>} : memref<36x256xf32, #tpu.memory_space<vmem>>, vector<4x32xf32>,
    %c0_35 = arith.constant 0 : index
    %c0_36 = arith.constant 0 : index
    %c32_37 = arith.constant 32 : index
    %30 = vector.load %arg1[%c0_35, %c0_36, %c32_37] : memref<1x4x256xf32, #tpu.memory_space<vmem>>, vector<1x4x224xf32>
    %31 = vector.shape_cast %30 : vector<1x4x224xf32> to vector<4x224xf32>
    %c24_38 = arith.constant 24 : index
    %c0_39 = arith.constant 0 : index
    %32 = vector.load %arg4[%c24_38, %c0_39] : memref<36x256xf32, #tpu.memory_space<vmem>>, vector<4x224xf32>
    tpu.vector_store %arg4[%c24_38, %c0_39], %31 {strides = array<i32>} : memref<36x256xf32, #tpu.memory_space<vmem>>, vector<4x224xf32>,
    %cst_40 = arith.constant 0.000000e+00 : f32
    %33 = vector.broadcast %cst_40 : f32 to vector<4x48xf32>
    %c28 = arith.constant 28 : index
    %c208 = arith.constant 208 : index
    %34 = vector.load %arg4[%c28, %c208] : memref<36x256xf32, #tpu.memory_space<vmem>>, vector<4x48xf32>
    tpu.vector_store %arg4[%c28, %c208], %33 {strides = array<i32>} : memref<36x256xf32, #tpu.memory_space<vmem>>, vector<4x48xf32>,
    %c0_41 = arith.constant 0 : index
    %c0_42 = arith.constant 0 : index
    %c48_43 = arith.constant 48 : index
    %35 = vector.load %arg1[%c0_41, %c0_42, %c48_43] : memref<1x4x256xf32, #tpu.memory_space<vmem>>, vector<1x4x208xf32>
    %36 = vector.shape_cast %35 : vector<1x4x208xf32> to vector<4x208xf32>
    %c28_44 = arith.constant 28 : index
    %c0_45 = arith.constant 0 : index
    %37 = vector.load %arg4[%c28_44, %c0_45] : memref<36x256xf32, #tpu.memory_space<vmem>>, vector<4x208xf32>
    tpu.vector_store %arg4[%c28_44, %c0_45], %36 {strides = array<i32>} : memref<36x256xf32, #tpu.memory_space<vmem>>, vector<4x208xf32>,
    %cst_46 = arith.constant 0.000000e+00 : f32
    %38 = vector.broadcast %cst_46 : f32 to vector<4x64xf32>
    %c32_47 = arith.constant 32 : index
    %c192 = arith.constant 192 : index
    %39 = vector.load %arg4[%c32_47, %c192] : memref<36x256xf32, #tpu.memory_space<vmem>>, vector<4x64xf32>
    tpu.vector_store %arg4[%c32_47, %c192], %38 {strides = array<i32>} : memref<36x256xf32, #tpu.memory_space<vmem>>, vector<4x64xf32>,
    %c0_48 = arith.constant 0 : index
    %c0_49 = arith.constant 0 : index
    %c64_50 = arith.constant 64 : index
    %40 = vector.load %arg1[%c0_48, %c0_49, %c64_50] : memref<1x4x256xf32, #tpu.memory_space<vmem>>, vector<1x4x192xf32>
    %41 = vector.shape_cast %40 : vector<1x4x192xf32> to vector<4x192xf32>
    %c32_51 = arith.constant 32 : index
    %c0_52 = arith.constant 0 : index
    %42 = vector.load %arg4[%c32_51, %c0_52] : memref<36x256xf32, #tpu.memory_space<vmem>>, vector<4x192xf32>
    tpu.vector_store %arg4[%c32_51, %c0_52], %41 {strides = array<i32>} : memref<36x256xf32, #tpu.memory_space<vmem>>, vector<4x192xf32>,
    %c0_53 = arith.constant 0 : index
    %c0_54 = arith.constant 0 : index
    %43 = vector.load %arg2[%c0_53, %c0_54] : memref<8x36xf32, #tpu.memory_space<vmem>>, vector<8x36xf32>
    %c0_55 = arith.constant 0 : index
    %c0_56 = arith.constant 0 : index
    %44 = vector.load %arg4[%c0_55, %c0_56] : memref<36x256xf32, #tpu.memory_space<vmem>>, vector<36x256xf32>
    %cst_57 = arith.constant dense<0.000000e+00> : vector<8x256xf32>
    %45 = tpu.matmul %43, %44, %cst_57 {dimension_numbers = #tpu.dot_dimension_numbers<[1], [0], [0], [1], [0, 0, 1, 1], [], []>} : vector<8x36xf32>, vector<36x256xf32>, vector<8x256xf32> -> vector<8x256xf32>
    %cst_58 = arith.constant dense<0.000000e+00> : vector<8xf32>
    %46 = vector.multi_reduction <add>, %45, %cst_58 [1] : vector<8x256xf32> to vector<8xf32>
    %47 = vector.shape_cast %46 : vector<8xf32> to vector<8x1xf32>
    %cst_59 = arith.constant 3.906250e-03 : f32
    %48 = vector.broadcast %cst_59 : f32 to vector<8x1xf32>
    %49 = arith.mulf %47, %48 : vector<8x1xf32>
    %50 = vector.broadcast %49 : vector<8x1xf32> to vector<8x256xf32>
    %51 = arith.subf %45, %50 : vector<8x256xf32>
    %52 = arith.mulf %51, %51 : vector<8x256xf32>
    %cst_60 = arith.constant dense<0.000000e+00> : vector<8xf32>
    %53 = vector.multi_reduction <add>, %52, %cst_60 [1] : vector<8x256xf32> to vector<8xf32>
    %54 = vector.shape_cast %53 : vector<8xf32> to vector<8x1xf32>
    %55 = tpu.concatenate %47, %54 in 1 : vector<8x1xf32>, vector<8x1xf32> -> vector<8x2xf32>
    %c0_61 = arith.constant 0 : index
    %c0_62 = arith.constant 0 : index
    %c0_63 = arith.constant 0 : index
    %56 = vector.load %arg3[%c0_61, %c0_62, %c0_63] : memref<1x8x2xf32, #tpu.memory_space<vmem>>, vector<1x8x2xf32>
    %57 = vector.shape_cast %56 : vector<1x8x2xf32> to vector<8x2xf32>
    %58 = vector.shape_cast %55 : vector<8x2xf32> to vector<1x8x2xf32>
    tpu.vector_store %arg3[%c0_61, %c0_62, %c0_63], %58 {strides = array<i32>} : memref<1x8x2xf32, #tpu.memory_space<vmem>>, vector<1x8x2xf32>,
    return
  }
  func.func @transform_0(%arg0: i32) -> (i32, i32, i32) {
    %c0_i32 = arith.constant 0 : i32
    %c0_i32_0 = arith.constant 0 : i32
    %c0_i32_1 = arith.constant 0 : i32
    return %arg0, %c0_i32, %c0_i32_0 : i32, i32, i32
  }
  func.func @transform_1(%arg0: i32) -> (i32, i32) {
    %c0_i32 = arith.constant 0 : i32
    %c0_i32_0 = arith.constant 0 : i32
    %c0_i32_1 = arith.constant 0 : i32
    return %c0_i32, %c0_i32_0 : i32, i32
  }
  func.func @transform_2(%arg0: i32) -> (i32, i32, i32) {
    %c0_i32 = arith.constant 0 : i32
    %c0_i32_0 = arith.constant 0 : i32
    %c0_i32_1 = arith.constant 0 : i32
    return %arg0, %c0_i32, %c0_i32_0 : i32, i32, i32
  }
}

</mosaic_0001>

<llo_original>
// kernel: tpu_custom_call.1
$region0: #{tpu_custom_call.1}
  #allocation0 [shape = 'u32[]', space=smem, size = 0x4, offset = 0x4, fixed_abs, tag = 'smem constant byte address 0x4 - core index']
  #allocation1 [shape = 'u32[144,128]{1,0:T(1,128)}', space=vmem, size = 0x12000, scoped, tag = 'internal scratch']
  #allocation2 [shape = 'f32[36,256]{1,0:T(8,128)}', space=vmem, size = 0xa000, scoped, tag = 'scratch operand']
  %s0 = inlined_call_operand.hbm [shape: f32[2,4,256], index: 0, kind: input, shape index: {}]
  %s1 = inlined_call_operand.hbm [shape: f32[8,36], index: 1, kind: input, shape index: {}]
  %s2 = inlined_call_operand.vmem [shape: f32[2,8,2], index: 2, kind: output, shape index: {}]
  %s3 = sld [smem:[#allocation0]]
  $region49: #{tpu_custom_call.1} parent=0
    _
  %s5 = ssub.s32 1, %s3
  %s6 = scalar_select 0, %s5, %s3
  $region1: #{tpu_custom_call.1} parent=0
    #allocation3 [shape = 'u8[8192]{0}', space=vmem, size = 0x2000, scoped, tag = 'input window, operand 0']
    #allocation4 [shape = 's32[2]{0}', space=sflag, size = 0x8, scoped, tag = 'scoped memory for tpu_custom_call.1']
    #allocation5 [shape = 'u8[4096]{0}', space=vmem, size = 0x1000, scoped, tag = 'input window, operand 1, single buffered']
    #allocation6 [shape = 's32[1]{0}', space=sflag, size = 0x4, scoped, tag = 'scoped memory for tpu_custom_call.1']
    %7 = vsyncpa [#allocation4], 0
    %s8 = scalar_lea.sflag [#allocation4], 1
    %9 = vsyncpa %s8, 0
    %10 = vsyncpa [#allocation6], 0
    loop: start=0, step=1, limit=4
    $region2: #{tpu_custom_call.1} parent=1 // loop_pre_header
      _
    $region3: #{tpu_custom_call.1} parent=1 // loop_header
      %s12 = sphi 0, %s16
      %p13 = scmp.ge.s32.totalorder %s12, 4
      %s22 = sphi 0, %s24
      %s25 = sphi 0, %s22
      %s26 = sphi 0, %s25
      %s42 = sphi 0, %s26
      %s46 = sphi 0, %s46
      %s48 = sphi 0, %s46
      %s49 = sphi 0, %s48
      %s63 = sphi 0, %s49
      %s69 = sphi 0, %s71
      %s72 = sphi 0, %s69
      %s73 = sphi 0, %s72
      %s89 = sphi 0, %s73
    $region4: #{tpu_custom_call.1} parent=1 // loop_header_branch
      %15 = sbr.rel (%p13) target = $region8
    $region5: #{tpu_custom_call.1} parent=1 // loop_body
      %s17 = ssub.s32 %s12, 1
      %s18 = ssub.s32 %s12, 2
      %s19 = sadd.s32 %s12, 1
      %s20 = ssub.s32 %s12, %s19
      %p21 = scmp.eq.s32.totalorder %s20, 0
      %s23 = sadd.s32 %s22, 1
      %s24 = scalar_select %p21, %s22, %s23
      %p27 = pneg %p21
      %p28 = scmp.eq.s32.totalorder %s12, 1
      %p29 = por %p27, %p28
      %p30 = scmp.ne.s32.totalorder %s22, %s25
      %p31 = scmp.eq.s32.totalorder %s12, 0
      %p32 = por %p30, %p31
      %p33 = scmp.ne.s32.totalorder %s22, %s25
      %p34 = scmp.eq.s32.totalorder %s17, 1
      %p35 = por %p33, %p34
      %p36 = scmp.ne.s32.totalorder %s25, %s26
      %p37 = scmp.eq.s32.totalorder %s17, 0
      %p38 = por %p36, %p37
      %p39 = scmp.ne.s32.totalorder %s25, %s26
      %p40 = scmp.eq.s32.totalorder %s18, 1
      %p41 = por %p39, %p40
      %p43 = scmp.ne.s32.totalorder %s26, %s42
      %p44 = scmp.eq.s32.totalorder %s18, 0
      %p45 = por %p43, %p44
      %s47 = sadd.s32 %s46, 1
      %p50 = scmp.eq.s32.totalorder %s12, 1
      %p51 = scmp.ne.s32.totalorder %s46, %s48
      %p52 = scmp.eq.s32.totalorder %s12, 0
      %p53 = por %p51, %p52
      %p54 = scmp.ne.s32.totalorder %s46, %s48
      %p55 = scmp.eq.s32.totalorder %s17, 1
      %p56 = por %p54, %p55
      %p57 = scmp.ne.s32.totalorder %s48, %s49
      %p58 = scmp.eq.s32.totalorder %s17, 0
      %p59 = por %p57, %p58
      %p60 = scmp.ne.s32.totalorder %s48, %s49
      %p61 = scmp.eq.s32.totalorder %s18, 1
      %p62 = por %p60, %p61
      %p64 = scmp.ne.s32.totalorder %s49, %s63
      %p65 = scmp.eq.s32.totalorder %s18, 0
      %p66 = por %p64, %p65
      %s67 = ssub.s32 %s12, %s19
      %p68 = scmp.eq.s32.totalorder %s67, 0
      %s70 = sadd.s32 %s69, 1
      %s71 = scalar_select %p68, %s69, %s70
      %p74 = pneg %p68
      %p75 = scmp.eq.s32.totalorder %s12, 1
      %p76 = por %p74, %p75
      %p77 = scmp.ne.s32.totalorder %s69, %s72
      %p78 = scmp.eq.s32.totalorder %s12, 0
      %p79 = por %p77, %p78
      %p80 = scmp.ne.s32.totalorder %s69, %s72
      %p81 = scmp.eq.s32.totalorder %s17, 1
      %p82 = por %p80, %p81
      %p83 = scmp.ne.s32.totalorder %s72, %s73
      %p84 = scmp.eq.s32.totalorder %s17, 0
      %p85 = por %p83, %p84
      %p86 = scmp.ne.s32.totalorder %s72, %s73
      %p87 = scmp.eq.s32.totalorder %s18, 1
      %p88 = por %p86, %p87
      %p90 = scmp.ne.s32.totalorder %s73, %s89
      %p91 = scmp.eq.s32.totalorder %s18, 0
      %p92 = por %p90, %p91
      %p93 = scmp.le.s32.totalorder 1, %s12
      %p94 = scmp.lt.s32.totalorder %s12, 3
      %p95 = pnand %p93, %p94
      %p96 = pneg %p95
      // Predicated region
      $region9: #{tpu_custom_call.1} parent=5 // pred_check
        _
      $region10: #{tpu_custom_call.1} parent=5 // pred_check_branch
        %98 = sbr.rel (%p95) target = $region12
      $region11: #{tpu_custom_call.1} parent=5 // pred_region
        %s99 = ssub.s32 %s12, 1
        // Predicated region
        $region13: #{tpu_custom_call.1} parent=11 // pred_check
          %p100 = pneg %p59
        $region14: #{tpu_custom_call.1} parent=11 // pred_check_branch
          %102 = sbr.rel (%p100) target = $region16
        $region15: #{tpu_custom_call.1} parent=11 // pred_region
          %s104 = ssub.s32 128, 128
          %105 = vsyncadd [#allocation6], %s104
          %s107 = sshll.u32 [#allocation5], 4
          %s108 = int_to_ptr.vmem [resolvable:$true] %s107
          %110 = dma.hbm_to_vmem [thread:$0]  %s1, 128, %s108, [#allocation6]
        $region16: #{tpu_custom_call.1} parent=11 // pred_fallthru
          _
      $region12: #{tpu_custom_call.1} parent=5 // pred_fallthru
        _
      %p111 = scmp.lt.s32.totalorder %s12, 2
      // Predicated region
      $region17: #{tpu_custom_call.1} parent=5 // pred_check
        %p112 = pneg %p111
      $region18: #{tpu_custom_call.1} parent=5 // pred_check_branch
        %114 = sbr.rel (%p112) target = $region20
      $region19: #{tpu_custom_call.1} parent=5 // pred_region
        // Predicated region
        $region21: #{tpu_custom_call.1} parent=19 // pred_check
          %p115 = pneg %p32
        $region22: #{tpu_custom_call.1} parent=19 // pred_check_branch
          %117 = sbr.rel (%p115) target = $region24
        $region23: #{tpu_custom_call.1} parent=19 // pred_region
          %s118 = sand.u32 %s22, 1
          %s119 = scalar_lea.sflag [#allocation4], %s118
          %s120 = sand.u32 %s22, 1
          %s121 = smul.addr %s120, 8
          %s122 = scalar_lea.vmem [#allocation3], %s121
          %s124 = ssub.s32 128, 128
          %125 = vsyncadd %s119, %s124
          %s126 = smul.addr %s12, 2
          %s127 = smul.addr %s126, 64
          %s128 = scalar_lea.hbm %s0, %s127
          %s130 = sshll.u32 %s122, 4
          %s131 = int_to_ptr.vmem [resolvable:$true] %s130
          %133 = dma.hbm_to_vmem [thread:$0]  %s128, 128, %s131, %s119
        $region24: #{tpu_custom_call.1} parent=19 // pred_fallthru
          _
      $region20: #{tpu_custom_call.1} parent=5 // pred_fallthru
        _
      %p134 = scmp.le.s32.totalorder 1, %s12
      %p135 = scmp.lt.s32.totalorder %s12, 3
      %p136 = pnand %p134, %p135
      %p137 = pneg %p136
      // Predicated region
      $region25: #{tpu_custom_call.1} parent=5 // pred_check
        _
      $region26: #{tpu_custom_call.1} parent=5 // pred_check_branch
        %139 = sbr.rel (%p136) target = $region28
      $region27: #{tpu_custom_call.1} parent=5 // pred_region
        %s140 = ssub.s32 %s12, 1
        %s141 = sand.u32 %s25, 1
        %s142 = scalar_lea.sflag [#allocation4], %s141
        %s143 = sand.u32 %s25, 1
        %s144 = smul.addr %s143, 8
        %s145 = scalar_lea.vmem [#allocation3], %s144
        // Predicated region
        $region29: #{tpu_custom_call.1} parent=27 // pred_check
          %p146 = pneg %p38
        $region30: #{tpu_custom_call.1} parent=27 // pred_check_branch
          %148 = sbr.rel (%p146) target = $region32
        $region31: #{tpu_custom_call.1} parent=27 // pred_region
          %149 = dma.done %s142, 128
        $region32: #{tpu_custom_call.1} parent=27 // pred_fallthru
          _
        // Predicated region
        $region33: #{tpu_custom_call.1} parent=27 // pred_check
          %p150 = pneg %p59
        $region34: #{tpu_custom_call.1} parent=27 // pred_check_branch
          %152 = sbr.rel (%p150) target = $region36
        $region35: #{tpu_custom_call.1} parent=27 // pred_region
          %153 = dma.done [#allocation6], 128
        $region36: #{tpu_custom_call.1} parent=27 // pred_fallthru
          _
        %s154 = sand.u32 %s25, 1
        %s155 = scalar_lea.sflag [#allocation4], %s154
        %s156 = sand.u32 %s25, 1
        %s157 = smul.addr %s156, 8
        %s158 = scalar_lea.vmem [#allocation3], %s157
        %p159 = pneg %p38
        %p160 = pneg %p35
        %p161 = pneg %p59
        %p162 = pneg %p56
        %p163 = pneg %p85
        %p164 = pneg %p82
        %p165 = scmp.lt.s32.totalorder %s17, 1
        %s166 = scalar_select %p165, %s17, 1
        %s167 = smul.addr %s166, 8
        %s168 = scalar_lea.vmem %s2, %s167
        %p169 = scmp.lt.s32.totalorder %s17, 1
        %s170 = scalar_select %p169, %s17, 1
        %s171 = smul.addr %s170, 8
        %s172 = scalar_lea.vmem %s2, %s171
        %vm173 = vcmask 519168
        %174 = vst.msk [vmem:[#allocation2] sm:$0xf] %vm173, 0.0
        %v175 = vld [vmem:[%s145] sm:$0xff]
        %v177 = vcombine.high %v175, %v175
        %178 = vrot.lane.b32.xlu0 %v175, 64
        %v179 = vpop.permute.xlu0 %178
        %180 = vrot.lane.b32.xlu0 %v177, 64
        %v181 = vpop.permute.xlu0 %180
        %vm182 = vcmask 523264
        %v183 = vsel %vm182, %v179, %v181
        %vm186 = vcmask 1043968
        %187 = vst.msk [vmem:[#allocation2] sm:$0xf] %vm186, %v179
        %188 = vst [vmem:[#allocation2 + $0x8] sm:$0xf] %v183
        %vm189 = vcmask 392196
        %190 = vst.msk [vmem:[#allocation2] sm:$0xf0] %vm189, 0.0
        %v191 = vld [vmem:[%s145] sm:$0xff]
        %v193 = vcombine.low %v191, %v191
        %194 = vrot.lane.b32.xlu0 %v193, 48
        %v195 = vpop.permute.xlu0 %194
        %196 = vrot.lane.b32.xlu0 %v191, 48
        %v197 = vpop.permute.xlu0 %196
        %vm198 = vcmask 392192
        %v199 = vsel %vm198, %v195, %v197
        %vm202 = vcmask 1047940
        %203 = vst.msk [vmem:[#allocation2] sm:$0xf0] %vm202, %v195
        %204 = vst [vmem:[#allocation2 + $0x8] sm:$0xf0] %v199
        %vm205 = vcmask 257024
        %206 = vst.msk [vmem:[#allocation2 + $0x10] sm:$0xf] %vm205, 0.0
        %v207 = vld [vmem:[%s145] sm:$0xff]
        %v209 = vcombine.high %v207, %v207
        %210 = vrot.lane.b32.xlu0 %v207, 32
        %v211 = vpop.permute.xlu0 %210
        %212 = vrot.lane.b32.xlu0 %v209, 32
        %v213 = vpop.permute.xlu0 %212
        %vm214 = vcmask 261120
        %v215 = vsel %vm214, %v211, %v213
        %vm218 = vcmask 1043712
        %219 = vst.msk [vmem:[#allocation2 + $0x10] sm:$0xf] %vm218, %v211
        %220 = vst [vmem:[#allocation2 + $0x18] sm:$0xf] %v215
        %vm221 = vcmask 130052
        %222 = vst.msk [vmem:[#allocation2 + $0x10] sm:$0xf0] %vm221, 0.0
        %v223 = vld [vmem:[%s145] sm:$0xff]
        %v225 = vcombine.low %v223, %v223
        %226 = vrot.lane.b32.xlu0 %v225, 16
        %v227 = vpop.permute.xlu0 %226
        %228 = vrot.lane.b32.xlu0 %v223, 16
        %v229 = vpop.permute.xlu0 %228
        %vm230 = vcmask 130048
        %v231 = vsel %vm230, %v227, %v229
        %vm234 = vcmask 1047684
        %235 = vst.msk [vmem:[#allocation2 + $0x10] sm:$0xf0] %vm234, %v227
        %236 = vst [vmem:[#allocation2 + $0x18] sm:$0xf0] %v231
        %v237 = vld [vmem:[%s145] sm:$0xff]
        %v239 = vcombine.high %v237, %v237
        %241 = vst [vmem:[#allocation2 + $0x20] sm:$0xf] %v237
        %242 = vst [vmem:[#allocation2 + $0x28] sm:$0xf] %v239
        %vm243 = vcmask 1048452
        %244 = vst.msk [vmem:[#allocation2 + $0x28] sm:$0xf0] %vm243, 0.0
        %v245 = vld [vmem:[%s145] sm:$0xff]
        %v247 = vcombine.low %v245, %v245
        %248 = vrot.lane.b32.xlu0 %v247, 112
        %v249 = vpop.permute.xlu0 %248
        %250 = vrot.lane.b32.xlu0 %v245, 112
        %v251 = vpop.permute.xlu0 %250
        %vm252 = vcmask 916480
        %v253 = vsel %vm252, %v249, %v251
        %256 = vst [vmem:[#allocation2 + $0x20] sm:$0xf0] %v253
        %vm257 = vcmask 916484
        %258 = vst.msk [vmem:[#allocation2 + $0x28] sm:$0xf0] %vm257, %v251
        %vm259 = vcmask 1044224
        %260 = vst.msk [vmem:[#allocation2 + $0x38] sm:$0xf] %vm259, 0.0
        %v261 = vld [vmem:[%s145] sm:$0xff]
        %v263 = vcombine.high %v261, %v261
        %264 = vrot.lane.b32.xlu0 %v261, 96
        %v265 = vpop.permute.xlu0 %264
        %266 = vrot.lane.b32.xlu0 %v263, 96
        %v267 = vpop.permute.xlu0 %266
        %vm268 = vcmask 785408
        %v269 = vsel %vm268, %v265, %v267
        %272 = vst [vmem:[#allocation2 + $0x30] sm:$0xf] %v269
        %vm273 = vcmask 781312
        %274 = vst.msk [vmem:[#allocation2 + $0x38] sm:$0xf] %vm273, %v267
        %vm275 = vcmask 1048196
        %276 = vst.msk [vmem:[#allocation2 + $0x38] sm:$0xf0] %vm275, 0.0
        %v277 = vld [vmem:[%s145] sm:$0xff]
        %v279 = vcombine.low %v277, %v277
        %280 = vrot.lane.b32.xlu0 %v279, 80
        %v281 = vpop.permute.xlu0 %280
        %282 = vrot.lane.b32.xlu0 %v277, 80
        %v283 = vpop.permute.xlu0 %282
        %vm284 = vcmask 654336
        %v285 = vsel %vm284, %v281, %v283
        %288 = vst [vmem:[#allocation2 + $0x30] sm:$0xf0] %v285
        %vm289 = vcmask 654340
        %290 = vst.msk [vmem:[#allocation2 + $0x38] sm:$0xf0] %vm289, %v283
        %291 = vst.msk [vmem:[#allocation2 + $0x48] sm:$0xf] %vm186, 0.0
        %v292 = vld [vmem:[%s145] sm:$0xff]
        %v294 = vcombine.high %v292, %v292
        %295 = vrot.lane.b32.xlu0 %v292, 64
        %v296 = vpop.permute.xlu0 %295
        %297 = vrot.lane.b32.xlu0 %v294, 64
        %v298 = vpop.permute.xlu0 %297
        %v299 = vsel %vm182, %v296, %v298
        %302 = vst [vmem:[#allocation2 + $0x40] sm:$0xf] %v299
        %303 = vst.msk [vmem:[#allocation2 + $0x48] sm:$0xf] %vm173, %v298
        %v304 = vld [vmem:[#allocation5] sm:$0xff]
        %v305 = vld [vmem:[#allocation2] sm:$0xff]
        %v306 = vld [vmem:[#allocation2 + $0x8] sm:$0xff]
        %v307 = vld [vmem:[#allocation2 + $0x10] sm:$0xff]
        %v308 = vld [vmem:[#allocation2 + $0x18] sm:$0xff]
        %v309 = vld [vmem:[#allocation2 + $0x20] sm:$0xff]
        %v310 = vld [vmem:[#allocation2 + $0x28] sm:$0xff]
        %v311 = vld [vmem:[#allocation2 + $0x30] sm:$0xff]
        %v312 = vld [vmem:[#allocation2 + $0x38] sm:$0xff]
        %v313 = vld [vmem:[#allocation2 + $0x40] sm:$0xf]
        %v314 = vld [vmem:[#allocation2 + $0x48] sm:$0xf]
        %vm315 = vcmask 293888
        %v317 = vsel %vm315, %v304, 0
        %vm319 = vcmask 1043456
        %v321 = vsel %vm319, %v313, 0
        %v324 = vsel %vm319, %v314, 0
        %326 = vmatprep.subr.mxu0 0.0
        %327 = vmatpush1.msra.mxu0 0.0
        %328 = vmatprep.subr.mxu0 0.0
        %329 = vmatpush1.msra.mxu0 0.0
        %330 = vmatprep.subr.mxu0 0.0
        %331 = vmatpush1.msra.mxu0 0.0
        %332 = vmatprep.subr.mxu0 0.0
        %333 = vmatpush1.msra.mxu0 0.0
        %334 = vmatprep.subr.mxu0 0.0
        %335 = vmatpush1.msra.mxu0 0.0
        %336 = vmatprep.subr.mxu0 0.0
        %337 = vmatpush1.msra.mxu0 0.0
        %338 = vmatprep.subr.mxu0 0.0
        %339 = vmatpush1.msra.mxu0 0.0
        %340 = vmatprep.subr.mxu0 0.0
        %341 = vmatpush1.msra.mxu0 0.0
        %342 = vmatprep.subr.mxu0 0.0
        %343 = vmatpush1.msra.mxu0 0.0
        %344 = vmatprep.subr.mxu0 0.0
        %345 = vmatpush1.msra.mxu0 0.0
        %346 = vmatprep.subr.mxu0 0.0
        %347 = vmatpush1.msra.mxu0 0.0
        %348 = vmatprep.subr.mxu0 %v324
        %349 = vmatpush1.msra.mxu0 %v321
        %350 = vmatprep.subr.mxu0 %v312
        %351 = vmatpush1.msra.mxu0 %v311
        %352 = vmatprep.subr.mxu0 %v310
        %353 = vmatpush1.msra.mxu0 %v309
        %354 = vmatprep.subr.mxu0 %v308
        %355 = vmatpush1.msra.mxu0 %v307
        %356 = vmatprep.subr.mxu0 %v306
        %357 = vmatpush1.msra.mxu0 %v305
        %358 = vmatprep.subr.mxu0 0.0
        %359 = vmatpush2.msra.mxu0 0.0
        %360 = vmatprep.subr.mxu0 0.0
        %361 = vmatpush2.msra.mxu0 0.0
        %362 = vmatprep.subr.mxu0 0.0
        %363 = vmatpush2.msra.mxu0 0.0
        %364 = vmatprep.subr.mxu0 0.0
        %365 = vmatpush2.msra.mxu0 0.0
        %366 = vmatprep.subr.mxu0 0.0
        %367 = vmatpush2.msra.mxu0 0.0
        %368 = vmatprep.subr.mxu0 0.0
        %369 = vmatpush2.msra.mxu0 0.0
        %370 = vmatprep.subr.mxu0 0.0
        %371 = vmatpush2.msra.mxu0 0.0
        %372 = vmatprep.subr.mxu0 0.0
        %373 = vmatpush2.msra.mxu0 0.0
        %374 = vmatprep.subr.mxu0 0.0
        %375 = vmatpush2.msra.mxu0 0.0
        %376 = vmatprep.subr.mxu0 0.0
        %377 = vmatpush2.msra.mxu0 0.0
        %378 = vmatprep.subr.mxu0 0.0
        %379 = vmatpush2.msra.mxu0 0.0
        %380 = vmatprep.subr.mxu0 0.0
        %381 = vmatpush2.msra.mxu0 0.0
        %382 = vmatprep.subr.mxu0 0.0
        %383 = vmatpush2.msra.mxu0 0.0
        %384 = vmatprep.subr.mxu0 0.0
        %385 = vmatpush2.msra.mxu0 0.0
        %386 = vmatprep.subr.mxu0 0.0
        %387 = vmatpush2.msra.mxu0 0.0
        %388 = vmatprep.subr.mxu0 0.0
        %389 = vmatpush2.msra.mxu0 0.0
        %390 = vmatprep.mubr.f32.mxu0 0.0
        %391 = vmatmul.mubr.f32.gmra.mxu0 %v317
        %v392 = vpop.f32.mrf.mxu0
        %v393 = vadd.f32 0.0, %v392
        %v394 = vpop.f32.mrf.mxu0
        %v395 = vadd.f32 0.0, %v394
        %396 = vdwg.mxu0
        %v397 = vadd.f32 %v393, %v395
        %398 = vadd.xlane.f32.xlu0 %v397
        %v399 = vpop.xlane.xlu0 %398
        %v400 = vmul.f32 %v399, 0.00390625
        %v401 = vsub.f32 %v393, %v400
        %v402 = vsub.f32 %v395, %v400
        %v403 = vmul.f32 %v401, %v401
        %v404 = vmul.f32 %v402, %v402
        %v405 = vadd.f32 %v403, %v404
        %406 = vadd.xlane.f32.xlu0 %v405
        %v407 = vpop.xlane.xlu0 %406
        %vm408 = vcmask 7168
        %v409 = vsel %vm408, %v399, %v407
        %vm410 = vcmask 15360
        %411 = vst.msk [vmem:[%s172] sm:$0xff] %vm410, %v409
        %p412 = scmp.lt.s32.totalorder %s17, 1
        %s413 = scalar_select %p412, %s17, 1
        %s414 = smul.addr %s413, 8
        %s415 = scalar_lea.vmem %s2, %s414
        // Predicated region
        $region37: #{tpu_custom_call.1} parent=27 // pred_check
          %p416 = pneg %p82
        $region38: #{tpu_custom_call.1} parent=27 // pred_check_branch
          %418 = sbr.rel (%p416) target = $region40
        $region39: #{tpu_custom_call.1} parent=27 // pred_region
          _
        $region40: #{tpu_custom_call.1} parent=27 // pred_fallthru
          _
      $region28: #{tpu_custom_call.1} parent=5 // pred_fallthru
        _
      %p419 = scmp.le.s32.totalorder 2, %s12
      // Predicated region
      $region41: #{tpu_custom_call.1} parent=5 // pred_check
        %p420 = pneg %p419
      $region42: #{tpu_custom_call.1} parent=5 // pred_check_branch
        %422 = sbr.rel (%p420) target = $region44
      $region43: #{tpu_custom_call.1} parent=5 // pred_region
        %s423 = ssub.s32 %s12, 2
        // Predicated region
        $region45: #{tpu_custom_call.1} parent=43 // pred_check
          %p424 = pneg %p88
        $region46: #{tpu_custom_call.1} parent=43 // pred_check_branch
          %426 = sbr.rel (%p424) target = $region48
        $region47: #{tpu_custom_call.1} parent=43 // pred_region
          %p427 = scmp.lt.s32.totalorder %s18, 1
          %s428 = scalar_select %p427, %s18, 1
          %s429 = smul.addr %s428, 8
          %s430 = scalar_lea.vmem %s2, %s429
        $region48: #{tpu_custom_call.1} parent=43 // pred_fallthru
          _
      $region44: #{tpu_custom_call.1} parent=5 // pred_fallthru
        _
    $region6: #{tpu_custom_call.1} parent=1 // loop_footer
      %s16 = sadd.s32 1, %s12
    $region7: #{tpu_custom_call.1} parent=1 // loop_footer_branch
      %11 = sbr.rel target = $region3
    $region8: #{tpu_custom_call.1} parent=1 // loop_exit
      _
    %431 = vsyncpa [#allocation4], 1
    %s432 = scalar_lea.sflag [#allocation4], 1
    %433 = vsyncpa %s432, 1
    %434 = vsyncpa [#allocation6], 1

</llo_original>
